<compile_context>
chip_gen: v5e
topology: v5e:2x2
jax: 0.10.0
libtpu: 0.0.40
codegen_flags: <defaults>
</compile_context>

<pallas_src>
import functools

import jax
import jax.numpy as jnp
from jax.experimental import pallas as pl
from jax.experimental.pallas import tpu as pltpu


def attention_pooling_kernel(x_ref, w_ref, bidx_ref, out_ref, m_ref, l_ref,
                             *, n_valid, ragged):
    i = pl.program_id(0)
    n_tiles = pl.num_programs(0)
    n_t = x_ref.shape[0]
    b_pad = out_ref.shape[0]

    @pl.when(i == 0)
    def _init():
        out_ref[...] = jnp.zeros_like(out_ref)
        m_ref[...] = jnp.full_like(m_ref, -jnp.inf)
        l_ref[...] = jnp.zeros_like(l_ref)

    x = x_ref[...]                      # [N_T, D] in the input's native dtype
    if ragged:
        # Last tile overhangs the (unpadded) node array: zero the garbage rows so
        # they cannot inject NaN/Inf into the segment-sum matmul (0*NaN = NaN).
        row_ids = i * n_t + jax.lax.broadcasted_iota(jnp.int32, (n_t, 1), 0)
        x = jnp.where(row_ids < n_valid, x, jnp.zeros_like(x))

    # Lane-dense logits: [1, N_T] = w @ x^T (contract over D). Bias is dropped:
    # softmax over all nodes is invariant to a constant shift of every logit.
    logits = jax.lax.dot_general(
        w_ref[...], x, dimension_numbers=(((1,), (1,)), ((), ())),
        preferred_element_type=jnp.float32)

    # Mask padded / overhang node columns to -inf (global node id >= n_valid).
    node_ids = i * n_t + jax.lax.broadcasted_iota(jnp.int32, (1, n_t), 1)
    logits = jnp.where(node_ids < n_valid, logits, -jnp.inf)

    # Online softmax (global over all nodes, matching F.softmax(..., dim=0)).
    m_old = m_ref[...]                                          # [1, 1]
    m_new = jnp.maximum(m_old, jnp.max(logits, axis=1, keepdims=True))
    scale = jnp.exp(m_old - m_new)                              # [1, 1]
    p = jnp.exp(logits - m_new)                                 # [1, N_T]
    m_ref[...] = m_new
    l_ref[...] = l_ref[...] * scale + jnp.sum(p, axis=1, keepdims=True)

    # Fold the attention numerator into the one-hot segment matrix and let the MXU
    # do scaling + segment-sum in one matmul: [B_pad, N_T] @ [N_T, D].
    bidx = bidx_ref[...]                                        # [1, N_T] int32
    graph_ids = jax.lax.broadcasted_iota(jnp.int32, (b_pad, n_t), 0)
    scaled_onehot = jnp.where(graph_ids == bidx, p, 0.0).astype(x.dtype)

    # Accumulate directly into the resident output block (no extra VMEM scratch).
    out_ref[...] = out_ref[...] * scale + jnp.dot(
        scaled_onehot, x, preferred_element_type=jnp.float32)

    @pl.when(i == n_tiles - 1)
    def _finalize():
        # Exact reciprocal: computed once on a [1,1] value, off the hot path.
        out_ref[...] = out_ref[...] * pl.reciprocal(l_ref[...], approx=False)


def attention_pooling(node_features, weight, bias, batch_index, num_graphs,
                      *, tile_n=1024, vmem_budget_bytes=40 * 1024 * 1024):
    """node_features: [N, D] (f32 or bf16), weight: [1, D], bias: [1] (ignored:
       softmax shift-invariance), batch_index: [N] int -> pooled: [num_graphs, D] f32."""
    del bias  # mathematically redundant for softmax over dim=0
    n, d = node_features.shape
    assert n >= 1 and num_graphs >= 1
    x_dtype = node_features.dtype
    x_itemsize = jnp.dtype(x_dtype).itemsize

    b_pad = max(8, pl.cdiv(num_graphs, 8) * 8)        # >= 8 sublanes for the output

    # Node tile: multiple of 128, as large as possible while fitting a conservative
    # VMEM budget (valid on v5e / v6e / v7x); never larger than needed for N.
    n_t = max(128, min((tile_n // 128) * 128, pl.cdiv(n, 128) * 128))

    def vmem_bytes(nt):
        return (2 * nt * d * x_itemsize          # double-buffered x tiles
                + b_pad * d * 4                  # resident output accumulator
                + b_pad * nt * 4                 # one-hot temporary
                + 2 * nt * d * 4)                # f32 in-kernel temporaries (headroom)

    while n_t > 128 and vmem_bytes(n_t) > vmem_budget_bytes:
        n_t -= 128

    n_tiles = pl.cdiv(n, n_t)
    n_pad = n_tiles * n_t
    ragged = (n_pad != n)

    # x is passed straight through (no padded copy, no forced f32 upcast).
    w = weight.reshape(1, d).astype(x_dtype)
    bidx = jnp.full((1, n_pad), -1, jnp.int32)        # -1 => never matches a graph id
    bidx = bidx.at[0, :n].set(batch_index.astype(jnp.int32))

    kernel = functools.partial(attention_pooling_kernel, n_valid=n, ragged=ragged)

    out = pl.pallas_call(
        kernel,
        out_shape=jax.ShapeDtypeStruct((b_pad, d), jnp.float32),
        grid_spec=pltpu.PrefetchScalarGridSpec(
            num_scalar_prefetch=0,
            grid=(n_tiles,),
            in_specs=[
                pl.BlockSpec((n_t, d), lambda i: (i, 0)),   # x tile (last may overhang)
                pl.BlockSpec((1, d), lambda i: (0, 0)),     # weight row
                pl.BlockSpec((1, n_t), lambda i: (0, i)),   # batch-index tile
            ],
            out_specs=pl.BlockSpec((b_pad, d), lambda i: (0, 0)),
            scratch_shapes=[
                pltpu.VMEM((1, 1), jnp.float32),   # running max m
                pltpu.VMEM((1, 1), jnp.float32),   # running denom l
            ],
        ),
        compiler_params=pltpu.CompilerParams(
            dimension_semantics=("arbitrary",),
            vmem_limit_bytes=48 * 1024 * 1024,
        ),
    )(node_features, w, bidx)

    return out[:num_graphs, :]


def _reference(node_features, weight, bias, batch_index, num_graphs):
    logits = node_features @ weight.reshape(-1, 1) + bias.reshape(1, 1)
    attn = jax.nn.softmax(logits, axis=0)
    weighted = node_features * attn
    return jax.ops.segment_sum(weighted, batch_index, num_segments=num_graphs)


if __name__ == "__main__":
    key = jax.random.PRNGKey(0)
    N, D, B = 16, 32, 2   # N nodes, node_dim D, B graphs

    k_x, k_w, k_b = jax.random.split(key, 3)
    node_features = jax.random.normal(k_x, (N, D), dtype=jnp.float32)
    # nn.Linear(node_dim, 1): weight [1, node_dim], bias [1]
    weight = jax.random.normal(k_w, (1, D), dtype=jnp.float32) * 0.1
    bias = jax.random.normal(k_b, (1,), dtype=jnp.float32) * 0.1
    batch_index = jnp.array([0] * 8 + [1] * 8, dtype=jnp.int32)

    out = attention_pooling(node_features, weight, bias, batch_index, B)
    out = jax.block_until_ready(out)

    ref = _reference(node_features, weight, bias, batch_index, B)
    assert out.shape == (B, D)
    assert jnp.allclose(out, ref, atol=1e-5, rtol=1e-4), "mismatch vs reference"

    print("KERNEL_OK")
</pallas_src>

<mosaic_0001>
module attributes {stable_mosaic.version = 11 : i64} {
  func.func @attention_pooling_kernel(%arg0: i32, %arg1: memref<128x32xf32, #tpu.memory_space<vmem>>, %arg2: memref<1x32xf32, #tpu.memory_space<vmem>>, %arg3: memref<1x128xi32, #tpu.memory_space<vmem>>, %arg4: memref<8x32xf32, #tpu.memory_space<vmem>>, %arg5: memref<1x1xf32, #tpu.memory_space<vmem>>, %arg6: memref<1x1xf32, #tpu.memory_space<vmem>>) attributes {dimension_semantics = [#tpu.dimension_semantics<arbitrary>], iteration_bounds = array<i64: 1>, scalar_prefetch = 0 : i64, scratch_operands = 2 : i64, tpu.core_type = #tpu.core_type<tc>, window_params = [{transform_indices = @transform_0, window_bounds = array<i64: 128, 32>}, {pipeline_mode = #tpu.pipeline_mode<synchronous>, transform_indices = @transform_1, window_bounds = array<i64: 1, 32>}, {transform_indices = @transform_2, window_bounds = array<i64: 1, 128>}, {pipeline_mode = #tpu.pipeline_mode<synchronous>, transform_indices = @transform_3, window_bounds = array<i64: 8, 32>}]} {
    %c0_i32 = arith.constant 0 : i32
    %0 = arith.cmpi eq, %arg0, %c0_i32 : i32
    %1 = arith.extui %0 : i1 to i32
    %c0_i32_0 = arith.constant 0 : i32
    %2 = arith.cmpi ne, %1, %c0_i32_0 : i32
    scf.if %2 {
      %cst_28 = arith.constant 0.000000e+00 : f32
      %57 = vector.broadcast %cst_28 : f32 to vector<8x32xf32>
      %c0_29 = arith.constant 0 : index
      %c0_30 = arith.constant 0 : index
      %58 = vector.load %arg4[%c0_29, %c0_30] : memref<8x32xf32, #tpu.memory_space<vmem>>, vector<8x32xf32>
      tpu.vector_store %arg4[%c0_29, %c0_30], %57 {strides = array<i32>} : memref<8x32xf32, #tpu.memory_space<vmem>>, vector<8x32xf32>,
      %cst_31 = arith.constant 0xFF800000 : f32
      %59 = vector.broadcast %cst_31 : f32 to vector<1x1xf32>
      %c0_32 = arith.constant 0 : index
      %c0_33 = arith.constant 0 : index
      %60 = vector.load %arg5[%c0_32, %c0_33] : memref<1x1xf32, #tpu.memory_space<vmem>>, vector<1x1xf32>
      tpu.vector_store %arg5[%c0_32, %c0_33], %59 {strides = array<i32>} : memref<1x1xf32, #tpu.memory_space<vmem>>, vector<1x1xf32>,
      %cst_34 = arith.constant 0.000000e+00 : f32
      %61 = vector.broadcast %cst_34 : f32 to vector<1x1xf32>
      %c0_35 = arith.constant 0 : index
      %c0_36 = arith.constant 0 : index
      %62 = vector.load %arg6[%c0_35, %c0_36] : memref<1x1xf32, #tpu.memory_space<vmem>>, vector<1x1xf32>
      tpu.vector_store %arg6[%c0_35, %c0_36], %61 {strides = array<i32>} : memref<1x1xf32, #tpu.memory_space<vmem>>, vector<1x1xf32>,
    } else {
    }
    %c0 = arith.constant 0 : index
    %c0_1 = arith.constant 0 : index
    %3 = vector.load %arg1[%c0, %c0_1] : memref<128x32xf32, #tpu.memory_space<vmem>>, vector<128x32xf32>
    %c128_i32 = arith.constant 128 : i32
    %4 = arith.muli %arg0, %c128_i32 : i32
    %5 = tpu.iota {dimensions = array<i32: 0>} : vector<128x1xi32>
    %6 = vector.broadcast %4 : i32 to vector<128x1xi32>
    %7 = arith.addi %6, %5 : vector<128x1xi32>
    %c16_i32 = arith.constant 16 : i32
    %8 = vector.broadcast %c16_i32 : i32 to vector<128x1xi32>
    %9 = arith.cmpi slt, %7, %8 : vector<128x1xi32>
    %cst = arith.constant 0.000000e+00 : f32
    %10 = vector.broadcast %cst : f32 to vector<128x32xf32>
    %11 = vector.shape_cast %9 : vector<128x1xi1> to vector<128x1xi1>
    %12 = vector.broadcast %11 : vector<128x1xi1> to vector<128x32xi1>
    %13 = arith.select %12, %3, %10 : vector<128x32xi1>, vector<128x32xf32>
    %c0_2 = arith.constant 0 : index
    %c0_3 = arith.constant 0 : index
    %14 = vector.load %arg2[%c0_2, %c0_3] : memref<1x32xf32, #tpu.memory_space<vmem>>, vector<1x32xf32>
    %cst_4 = arith.constant dense<0.000000e+00> : vector<1x128xf32>
    %15 = tpu.matmul %14, %13, %cst_4 {dimension_numbers = #tpu.dot_dimension_numbers<[1], [1], [0], [0], [0, 0, 1, 0], [], []>} : vector<1x32xf32>, vector<128x32xf32>, vector<1x128xf32> -> vector<1x128xf32>
    %c128_i32_5 = arith.constant 128 : i32
    %16 = arith.muli %arg0, %c128_i32_5 : i32
    %17 = tpu.iota {dimensions = array<i32: 1>} : vector<1x128xi32>
    %18 = vector.broadcast %16 : i32 to vector<1x128xi32>
    %19 = arith.addi %18, %17 : vector<1x128xi32>
    %c16_i32_6 = arith.constant 16 : i32
    %20 = vector.broadcast %c16_i32_6 : i32 to vector<1x128xi32>
    %21 = arith.cmpi slt, %19, %20 : vector<1x128xi32>
    %cst_7 = arith.constant 0xFF800000 : f32
    %22 = vector.broadcast %cst_7 : f32 to vector<1x128xf32>
    %23 = arith.select %21, %15, %22 : vector<1x128xi1>, vector<1x128xf32>
    %c0_8 = arith.constant 0 : index
    %c0_9 = arith.constant 0 : index
    %24 = vector.load %arg5[%c0_8, %c0_9] : memref<1x1xf32, #tpu.memory_space<vmem>>, vector<1x1xf32>
    %cst_10 = arith.constant dense<0xFF800000> : vector<1xf32>
    %25 = vector.multi_reduction <maximumf>, %23, %cst_10 [1] : vector<1x128xf32> to vector<1xf32>
    %26 = vector.shape_cast %25 : vector<1xf32> to vector<1x1xf32>
    %27 = arith.maximumf %24, %26 : vector<1x1xf32>
    %28 = arith.subf %24, %27 : vector<1x1xf32>
    %29 = math.exp %28 : vector<1x1xf32>
    %30 = vector.broadcast %27 : vector<1x1xf32> to vector<1x128xf32>
    %31 = arith.subf %23, %30 : vector<1x128xf32>
    %32 = math.exp %31 : vector<1x128xf32>
    %c0_11 = arith.constant 0 : index
    %c0_12 = arith.constant 0 : index
    %33 = vector.load %arg5[%c0_11, %c0_12] : memref<1x1xf32, #tpu.memory_space<vmem>>, vector<1x1xf32>
    tpu.vector_store %arg5[%c0_11, %c0_12], %27 {strides = array<i32>} : memref<1x1xf32, #tpu.memory_space<vmem>>, vector<1x1xf32>,
    %c0_13 = arith.constant 0 : index
    %c0_14 = arith.constant 0 : index
    %34 = vector.load %arg6[%c0_13, %c0_14] : memref<1x1xf32, #tpu.memory_space<vmem>>, vector<1x1xf32>
    %35 = arith.mulf %34, %29 : vector<1x1xf32>
    %cst_15 = arith.constant dense<0.000000e+00> : vector<1xf32>
    %36 = vector.multi_reduction <add>, %32, %cst_15 [1] : vector<1x128xf32> to vector<1xf32>
    %37 = vector.shape_cast %36 : vector<1xf32> to vector<1x1xf32>
    %38 = arith.addf %35, %37 : vector<1x1xf32>
    %c0_16 = arith.constant 0 : index
    %c0_17 = arith.constant 0 : index
    %39 = vector.load %arg6[%c0_16, %c0_17] : memref<1x1xf32, #tpu.memory_space<vmem>>, vector<1x1xf32>
    tpu.vector_store %arg6[%c0_16, %c0_17], %38 {strides = array<i32>} : memref<1x1xf32, #tpu.memory_space<vmem>>, vector<1x1xf32>,
    %c0_18 = arith.constant 0 : index
    %c0_19 = arith.constant 0 : index
    %40 = vector.load %arg3[%c0_18, %c0_19] : memref<1x128xi32, #tpu.memory_space<vmem>>, vector<1x128xi32>
    %41 = tpu.iota {dimensions = array<i32: 0>} : vector<8x128xi32>
    %42 = vector.broadcast %40 : vector<1x128xi32> to vector<8x128xi32>
    %43 = arith.cmpi eq, %41, %42 : vector<8x128xi32>
    %cst_20 = arith.constant 0.000000e+00 : f32
    %44 = vector.shape_cast %32 : vector<1x128xf32> to vector<1x128xf32>
    %45 = vector.broadcast %44 : vector<1x128xf32> to vector<8x128xf32>
    %46 = vector.broadcast %cst_20 : f32 to vector<8x128xf32>
    %47 = arith.select %43, %45, %46 : vector<8x128xi1>, vector<8x128xf32>
    %c0_21 = arith.constant 0 : index
    %c0_22 = arith.constant 0 : index
    %48 = vector.load %arg4[%c0_21, %c0_22] : memref<8x32xf32, #tpu.memory_space<vmem>>, vector<8x32xf32>
    %49 = vector.broadcast %29 : vector<1x1xf32> to vector<8x32xf32>
    %50 = arith.mulf %48, %49 : vector<8x32xf32>
    %cst_23 = arith.constant dense<0.000000e+00> : vector<8x32xf32>
    %51 = tpu.matmul %47, %13, %cst_23 {dimension_numbers = #tpu.dot_dimension_numbers<[1], [0], [0], [1], [0, 0, 1, 1], [], []>} : vector<8x128xf32>, vector<128x32xf32>, vector<8x32xf32> -> vector<8x32xf32>
    %52 = arith.addf %50, %51 : vector<8x32xf32>
    %c0_24 = arith.constant 0 : index
    %c0_25 = arith.constant 0 : index
    %53 = vector.load %arg4[%c0_24, %c0_25] : memref<8x32xf32, #tpu.memory_space<vmem>>, vector<8x32xf32>
    tpu.vector_store %arg4[%c0_24, %c0_25], %52 {strides = array<i32>} : memref<8x32xf32, #tpu.memory_space<vmem>>, vector<8x32xf32>,
    %c0_i32_26 = arith.constant 0 : i32
    %54 = arith.cmpi eq, %arg0, %c0_i32_26 : i32
    %55 = arith.extui %54 : i1 to i32
    %c0_i32_27 = arith.constant 0 : i32
    %56 = arith.cmpi ne, %55, %c0_i32_27 : i32
    scf.if %56 {
      %c0_28 = arith.constant 0 : index
      %c0_29 = arith.constant 0 : index
      %57 = vector.load %arg4[%c0_28, %c0_29] : memref<8x32xf32, #tpu.memory_space<vmem>>, vector<8x32xf32>
      %c0_30 = arith.constant 0 : index
      %c0_31 = arith.constant 0 : index
      %58 = vector.load %arg6[%c0_30, %c0_31] : memref<1x1xf32, #tpu.memory_space<vmem>>, vector<1x1xf32>
      %59 = tpu.reciprocal %58 : vector<1x1xf32> -> vector<1x1xf32>
      %60 = vector.broadcast %59 : vector<1x1xf32> to vector<8x32xf32>
      %61 = arith.mulf %57, %60 : vector<8x32xf32>
      %c0_32 = arith.constant 0 : index
      %c0_33 = arith.constant 0 : index
      %62 = vector.load %arg4[%c0_32, %c0_33] : memref<8x32xf32, #tpu.memory_space<vmem>>, vector<8x32xf32>
      tpu.vector_store %arg4[%c0_32, %c0_33], %61 {strides = array<i32>} : memref<8x32xf32, #tpu.memory_space<vmem>>, vector<8x32xf32>,
    } else {
    }
    return
  }
  func.func @transform_0(%arg0: i32) -> (i32, i32) {
    %c0_i32 = arith.constant 0 : i32
    %c0_i32_0 = arith.constant 0 : i32
    return %arg0, %c0_i32 : i32, i32
  }
  func.func @transform_1(%arg0: i32) -> (i32, i32) {
    %c0_i32 = arith.constant 0 : i32
    %c0_i32_0 = arith.constant 0 : i32
    %c0_i32_1 = arith.constant 0 : i32
    return %c0_i32, %c0_i32_0 : i32, i32
  }
  func.func @transform_2(%arg0: i32) -> (i32, i32) {
    %c0_i32 = arith.constant 0 : i32
    %c0_i32_0 = arith.constant 0 : i32
    return %c0_i32, %arg0 : i32, i32
  }
  func.func @transform_3(%arg0: i32) -> (i32, i32) {
    %c0_i32 = arith.constant 0 : i32
    %c0_i32_0 = arith.constant 0 : i32
    %c0_i32_1 = arith.constant 0 : i32
    return %c0_i32, %c0_i32_0 : i32, i32
  }
}

</mosaic_0001>

<llo_original>
// kernel: tpu_custom_call.1
$region0: #{tpu_custom_call.1}
  #allocation0 [shape = 'u32[]', space=smem, size = 0x4, offset = 0x4, fixed_abs, tag = 'smem constant byte address 0x4 - core index']
  #allocation1 [shape = 'u32[72,128]{1,0:T(1,128)}', space=vmem, size = 0x9000, scoped, tag = 'internal scratch']
  #allocation2 [shape = 'f32[1,1]{1,0:T(1,128)}', space=vmem, size = 0x200, scoped, tag = 'scratch operand']
  #allocation3 [shape = 'f32[1,1]{1,0:T(1,128)}', space=vmem, size = 0x200, scoped, tag = 'scratch operand']
  %s0 = inlined_call_operand.hbm [shape: f32[16,32], index: 0, kind: input, shape index: {}]
  %s1 = inlined_call_operand.hbm [shape: f32[1,32], index: 1, kind: input, shape index: {}]
  %s2 = inlined_call_operand.vmem [shape: s32[1,128], index: 2, kind: input, shape index: {}]
  %s3 = inlined_call_operand.hbm [shape: f32[8,32], index: 3, kind: output, shape index: {}]
  %s4 = sld [smem:[#allocation0]]
  $region38: #{tpu_custom_call.1} parent=0
    _
  %s6 = ssub.s32 1, %s4
  %s7 = scalar_select 0, %s6, %s4
  $region1: #{tpu_custom_call.1} parent=0
    #allocation4 [shape = 'u8[65536]{0}', space=vmem, size = 0x10000, scoped, tag = 'input window, operand 0, single buffered']
    #allocation5 [shape = 's32[1]{0}', space=sflag, size = 0x4, scoped, tag = 'scoped memory for tpu_custom_call.1']
    #allocation6 [shape = 's32[1]{0}', space=sflag, size = 0x4, scoped, tag = 'scoped memory for tpu_custom_call.1']
    #allocation7 [shape = 'u8[512]{0}', space=vmem, size = 0x400, scoped, tag = 'input window, operand 1, single buffered']
    #allocation8 [shape = 's32[1]{0}', space=sflag, size = 0x4, scoped, tag = 'scoped memory for tpu_custom_call.1']
    #allocation9 [shape = 'u8[4096]{0}', space=vmem, size = 0x1000, scoped, tag = 'output window, operand 0, single buffered']
    %8 = vsyncpa [#allocation5], 0
    %9 = vsyncpa [#allocation8], 0
    %10 = vsyncpa [#allocation6], 0
    // Predicated region
    $region2: #{tpu_custom_call.1} parent=1 // pred_check
      _
    $region3: #{tpu_custom_call.1} parent=1 // pred_check_branch
      %12 = sbr.rel (0) target = $region5
    $region4: #{tpu_custom_call.1} parent=1 // pred_region
      %14 = vsyncadd [#allocation5], 1792
      %s15 = sshll.u32 %s0, 4
      %s16 = int_to_ptr.hbm [resolvable:$true] %s15
      %s17 = sshll.u32 [#allocation4], 4
      %s18 = int_to_ptr.vmem [resolvable:$true] %s17
      %23 = dma.hbm_to_vmem [thread:$0]  %s16, 256, %s18, [#allocation5], 128, 128, 8
    $region5: #{tpu_custom_call.1} parent=1 // pred_fallthru
      _
    // Predicated region
    $region6: #{tpu_custom_call.1} parent=1 // pred_check
      _
    $region7: #{tpu_custom_call.1} parent=1 // pred_check_branch
      %25 = sbr.rel (0) target = $region9
    $region8: #{tpu_custom_call.1} parent=1 // pred_region
      %27 = vsyncadd [#allocation8], 0
      %s29 = sshll.u32 %s1, 4
      %s30 = int_to_ptr.hbm [resolvable:$true] %s29
      %s31 = sshll.u32 [#allocation7], 4
      %s32 = int_to_ptr.vmem [resolvable:$true] %s31
      %34 = dma.hbm_to_vmem [thread:$0]  %s30, 16, %s32, [#allocation8]
    $region9: #{tpu_custom_call.1} parent=1 // pred_fallthru
      _
    // Predicated region
    $region10: #{tpu_custom_call.1} parent=1 // pred_check
      _
    $region11: #{tpu_custom_call.1} parent=1 // pred_check_branch
      %36 = sbr.rel (0) target = $region13
    $region12: #{tpu_custom_call.1} parent=1 // pred_region
      _
    $region13: #{tpu_custom_call.1} parent=1 // pred_fallthru
      _
    // Predicated region
    $region14: #{tpu_custom_call.1} parent=1 // pred_check
      _
    $region15: #{tpu_custom_call.1} parent=1 // pred_check_branch
      %38 = sbr.rel (0) target = $region17
    $region16: #{tpu_custom_call.1} parent=1 // pred_region
      %40 = dma.done [#allocation5], 2048
    $region17: #{tpu_custom_call.1} parent=1 // pred_fallthru
      _
    // Predicated region
    $region18: #{tpu_custom_call.1} parent=1 // pred_check
      _
    $region19: #{tpu_custom_call.1} parent=1 // pred_check_branch
      %42 = sbr.rel (0) target = $region21
    $region20: #{tpu_custom_call.1} parent=1 // pred_region
      %44 = dma.done [#allocation8], 16
    $region21: #{tpu_custom_call.1} parent=1 // pred_fallthru
      _
    %p45 = scmp.eq.s32.totalorder 0, 0
    // Predicated region
    $region22: #{tpu_custom_call.1} parent=1 // pred_check
      %p46 = pneg %p45
    $region23: #{tpu_custom_call.1} parent=1 // pred_check_branch
      %48 = sbr.rel (%p46) target = $region25
    $region24: #{tpu_custom_call.1} parent=1 // pred_region
      %vm49 = vcmask 261120
      %50 = vst.msk [vmem:[#allocation9] sm:$0xff] %vm49, 0.0
      %vm51 = vcmask 0
      %52 = vst.msk [vmem:[#allocation2] sm:$0x1] %vm51, -inf
      %53 = vst.msk [vmem:[#allocation3] sm:$0x1] %vm51, 0.0
    $region25: #{tpu_custom_call.1} parent=1 // pred_fallthru
      _
    %v54 = vld [vmem:[#allocation4] sm:$0xff]
    %v55 = vld [vmem:[#allocation4 + $0x8] sm:$0xff]
    %v56 = vld [vmem:[#allocation4 + $0x10] sm:$0xff]
    %v57 = vld [vmem:[#allocation4 + $0x18] sm:$0xff]
    %v58 = vld [vmem:[#allocation4 + $0x20] sm:$0xff]
    %v59 = vld [vmem:[#allocation4 + $0x28] sm:$0xff]
    %v60 = vld [vmem:[#allocation4 + $0x30] sm:$0xff]
    %v61 = vld [vmem:[#allocation4 + $0x38] sm:$0xff]
    %v62 = vld [vmem:[#allocation4 + $0x40] sm:$0xff]
    %v63 = vld [vmem:[#allocation4 + $0x48] sm:$0xff]
    %v64 = vld [vmem:[#allocation4 + $0x50] sm:$0xff]
    %v65 = vld [vmem:[#allocation4 + $0x58] sm:$0xff]
    %v66 = vld [vmem:[#allocation4 + $0x60] sm:$0xff]
    %v67 = vld [vmem:[#allocation4 + $0x68] sm:$0xff]
    %v68 = vld [vmem:[#allocation4 + $0x70] sm:$0xff]
    %v69 = vld [vmem:[#allocation4 + $0x78] sm:$0xff]
    %s70 = smul.u32 0, 128
    %v71 = vlaneseq
    %v72 = vshrl.u32 %v71, 7
    %v73 = vadd.s32 %v72, 8
    %v74 = vadd.s32 %v72, 16
    %v75 = vadd.s32 %v72, 24
    %v76 = vadd.s32 %v72, 32
    %v77 = vadd.s32 %v72, 40
    %v78 = vadd.s32 %v72, 48
    %v79 = vadd.s32 %v72, 56
    %v80 = vadd.s32 %v72, 64
    %v81 = vadd.s32 %v72, 72
    %v82 = vadd.s32 %v72, 80
    %v83 = vadd.s32 %v72, 88
    %v84 = vadd.s32 %v72, 96
    %v85 = vadd.s32 %v72, 104
    %v86 = vadd.s32 %v72, 112
    %v87 = vadd.s32 %v72, 120
    %v88 = vstv %s70
    %v89 = vadd.s32 %v88, %v72
    %v90 = vadd.s32 %v88, %v73
    %v91 = vadd.s32 %v88, %v74
    %v92 = vadd.s32 %v88, %v75
    %v93 = vadd.s32 %v88, %v76
    %v94 = vadd.s32 %v88, %v77
    %v95 = vadd.s32 %v88, %v78
    %v96 = vadd.s32 %v88, %v79
    %v97 = vadd.s32 %v88, %v80
    %v98 = vadd.s32 %v88, %v81
    %v99 = vadd.s32 %v88, %v82
    %v100 = vadd.s32 %v88, %v83
    %v101 = vadd.s32 %v88, %v84
    %v102 = vadd.s32 %v88, %v85
    %v103 = vadd.s32 %v88, %v86
    %v104 = vadd.s32 %v88, %v87
    %vm105 = vcmp.lt.s32.totalorder %v89, 16
    %vm106 = vcmp.lt.s32.totalorder %v90, 16
    %vm107 = vcmp.lt.s32.totalorder %v91, 16
    %vm108 = vcmp.lt.s32.totalorder %v92, 16
    %vm109 = vcmp.lt.s32.totalorder %v93, 16
    %vm110 = vcmp.lt.s32.totalorder %v94, 16
    %vm111 = vcmp.lt.s32.totalorder %v95, 16
    %vm112 = vcmp.lt.s32.totalorder %v96, 16
    %vm113 = vcmp.lt.s32.totalorder %v97, 16
    %vm114 = vcmp.lt.s32.totalorder %v98, 16
    %vm115 = vcmp.lt.s32.totalorder %v99, 16
    %vm116 = vcmp.lt.s32.totalorder %v100, 16
    %vm117 = vcmp.lt.s32.totalorder %v101, 16
    %vm118 = vcmp.lt.s32.totalorder %v102, 16
    %vm119 = vcmp.lt.s32.totalorder %v103, 16
    %vm120 = vcmp.lt.s32.totalorder %v104, 16
    %v121 = vsel %vm105, 1, 0
    %v122 = vsel %vm106, 1, 0
    %v123 = vsel %vm107, 1, 0
    %v124 = vsel %vm108, 1, 0
    %v125 = vsel %vm109, 1, 0
    %v126 = vsel %vm110, 1, 0
    %v127 = vsel %vm111, 1, 0
    %v128 = vsel %vm112, 1, 0
    %v129 = vsel %vm113, 1, 0
    %v130 = vsel %vm114, 1, 0
    %v131 = vsel %vm115, 1, 0
    %v132 = vsel %vm116, 1, 0
    %v133 = vsel %vm117, 1, 0
    %v134 = vsel %vm118, 1, 0
    %v135 = vsel %vm119, 1, 0
    %v136 = vsel %vm120, 1, 0
    %vm137 = vcmp.eq.s32.totalorder %v121, 1
    %vm138 = vcmp.eq.s32.totalorder %v122, 1
    %vm139 = vcmp.eq.s32.totalorder %v123, 1
    %vm140 = vcmp.eq.s32.totalorder %v124, 1
    %vm141 = vcmp.eq.s32.totalorder %v125, 1
    %vm142 = vcmp.eq.s32.totalorder %v126, 1
    %vm143 = vcmp.eq.s32.totalorder %v127, 1
    %vm144 = vcmp.eq.s32.totalorder %v128, 1
    %vm145 = vcmp.eq.s32.totalorder %v129, 1
    %vm146 = vcmp.eq.s32.totalorder %v130, 1
    %vm147 = vcmp.eq.s32.totalorder %v131, 1
    %vm148 = vcmp.eq.s32.totalorder %v132, 1
    %vm149 = vcmp.eq.s32.totalorder %v133, 1
    %vm150 = vcmp.eq.s32.totalorder %v134, 1
    %vm151 = vcmp.eq.s32.totalorder %v135, 1
    %vm152 = vcmp.eq.s32.totalorder %v136, 1
    %v153 = vsel %vm137, %v54, 0.0
    %v154 = vsel %vm138, %v55, 0.0
    %v155 = vsel %vm139, %v56, 0.0
    %v156 = vsel %vm140, %v57, 0.0
    %v157 = vsel %vm141, %v58, 0.0
    %v158 = vsel %vm142, %v59, 0.0
    %v159 = vsel %vm143, %v60, 0.0
    %v160 = vsel %vm144, %v61, 0.0
    %v161 = vsel %vm145, %v62, 0.0
    %v162 = vsel %vm146, %v63, 0.0
    %v163 = vsel %vm147, %v64, 0.0
    %v164 = vsel %vm148, %v65, 0.0
    %v165 = vsel %vm149, %v66, 0.0
    %v166 = vsel %vm150, %v67, 0.0
    %v167 = vsel %vm151, %v68, 0.0
    %v168 = vsel %vm152, %v69, 0.0
    %v169 = vld [vmem:[#allocation7] sm:$0x1]
    %vm170 = vcmask 261120
    %v172 = vsel %vm170, %v169, 0
    %v175 = vsel %vm170, %v153, 0
    %v178 = vsel %vm170, %v154, 0
    %v181 = vsel %vm170, %v155, 0
    %v184 = vsel %vm170, %v156, 0
    %v187 = vsel %vm170, %v157, 0
    %v190 = vsel %vm170, %v158, 0
    %v193 = vsel %vm170, %v159, 0
    %v196 = vsel %vm170, %v160, 0
    %v199 = vsel %vm170, %v161, 0
    %v202 = vsel %vm170, %v162, 0
    %v205 = vsel %vm170, %v163, 0
    %v208 = vsel %vm170, %v164, 0
    %v211 = vsel %vm170, %v165, 0
    %v214 = vsel %vm170, %v166, 0
    %v217 = vsel %vm170, %v167, 0
    %v220 = vsel %vm170, %v168, 0
    %222 = vmatpush.xpose.msra.mxu0 %v220
    %223 = vmatpush.xpose.msra.mxu0 %v217
    %224 = vmatpush.xpose.msra.mxu0 %v214
    %225 = vmatpush.xpose.msra.mxu0 %v211
    %226 = vmatpush.xpose.msra.mxu0 %v208
    %227 = vmatpush.xpose.msra.mxu0 %v205
    %228 = vmatpush.xpose.msra.mxu0 %v202
    %229 = vmatpush.xpose.msra.mxu0 %v199
    %230 = vmatpush.xpose.msra.mxu0 %v196
    %231 = vmatpush.xpose.msra.mxu0 %v193
    %232 = vmatpush.xpose.msra.mxu0 %v190
    %233 = vmatpush.xpose.msra.mxu0 %v187
    %234 = vmatpush.xpose.msra.mxu0 %v184
    %235 = vmatpush.xpose.msra.mxu0 %v181
    %236 = vmatpush.xpose.msra.mxu0 %v178
    %237 = vmatpush.xpose.msra.mxu0 %v175
    %238 = vmatmul.f32.gmra.mxu0 %v172
    %v239 = vpop.f32.mrf.mxu0
    %v240 = vadd.f32 0.0, %v239
    %241 = vdwg.mxu0
    %v242 = vlaneseq
    %v243 = vand.u32 %v242, 127
    %v244 = vadd.s32 %v88, %v243
    %vm245 = vcmp.lt.s32.totalorder %v244, 16
    %v246 = vsel %vm245, %v240, -inf
    %v247 = vld [vmem:[#allocation2] sm:$0x1]
    %vm248 = vcmask 1040384
    %v249 = vsel %vm248, %v246, -inf
    %250 = vmax.xlane.f32.xlu0 %v249
    %v251 = vpop.xlane.xlu0 %250
    %v252 = vmax.f32 %v247, %v251
    %v253 = vsub.f32 %v247, %v252
    %v254 = vmul.f32 %v253, 1.442695
    %v255 = vpow.pop %v254
    %257 = vset.pattern.permute.xlu0 0
    %258 = vperm.xlu0 %257, %v252
    %v259 = vpop.permute.xlu0 %258
    %v261 = vperm.slane %v259, 0
    %v262 = vsub.f32 %v246, %v261
    %v263 = vmul.f32 %v262, 1.442695
    %v264 = vpow.pop %v263
    %vm265 = vcmask 0
    %266 = vst.msk [vmem:[#allocation2] sm:$0x1] %vm265, %v252
    %v267 = vld [vmem:[#allocation3] sm:$0x1]
    %v268 = vmul.f32 %v267, %v255
    %v269 = vsel %vm248, %v264, 0.0
    %270 = vadd.xlane.f32.xlu0 %v269
    %v271 = vpop.xlane.xlu0 %270
    %v272 = vadd.f32 %v268, %v271
    %273 = vst.msk [vmem:[#allocation3] sm:$0x1] %vm265, %v272
    %v274 = vld [vmem:[%s2] sm:$0x1]
    %v275 = vperm.slane %v274, 0
    %vm276 = vcmp.eq.s32.totalorder %v72, %v275
    %v277 = vperm.slane %v264, 0
    %v278 = vsel %vm276, %v277, 0.0
    %v279 = vld [vmem:[#allocation9] sm:$0xff]
    %v281 = vperm.slane %v255, 0
    %282 = vset.pattern.permute.xlu0 0
    %283 = vperm.xlu0 %282, %v281
    %v284 = vpop.permute.xlu0 %283
    %v286 = vmul.f32 %v279, %v284
    %287 = vmatpush.msra.mxu0 %v168
    %288 = vmatpush.msra.mxu0 %v167
    %289 = vmatpush.msra.mxu0 %v166
    %290 = vmatpush.msra.mxu0 %v165
    %291 = vmatpush.msra.mxu0 %v164
    %292 = vmatpush.msra.mxu0 %v163
    %293 = vmatpush.msra.mxu0 %v162
    %294 = vmatpush.msra.mxu0 %v161
    %295 = vmatpush.msra.mxu0 %v160
    %296 = vmatpush.msra.mxu0 %v159
    %297 = vmatpush.msra.mxu0 %v158
    %298 = vmatpush.msra.mxu0 %v157
    %299 = vmatpush.msra.mxu0 %v156
    %300 = vmatpush.msra.mxu0 %v155
    %301 = vmatpush.msra.mxu0 %v154
    %302 = vmatpush.msra.mxu0 %v153
    %303 = vmatmul.f32.gmra.mxu0 %v278
    %v304 = vpop.f32.mrf.mxu0
    %v305 = vadd.f32 0.0, %v304
    %306 = vdwg.mxu0
    %v307 = vadd.f32 %v286, %v305
    %308 = vst.msk [vmem:[#allocation9] sm:$0xff] %vm170, %v307
    // Predicated region
    $region26: #{tpu_custom_call.1} parent=1 // pred_check
      %p309 = pneg %p45
    $region27: #{tpu_custom_call.1} parent=1 // pred_check_branch
      %311 = sbr.rel (%p309) target = $region29
    $region28: #{tpu_custom_call.1} parent=1 // pred_region
      %v312 = vld [vmem:[#allocation9] sm:$0xff]
      %v313 = vld [vmem:[#allocation3] sm:$0x1]
      %v314 = vrcp.pop %v313
      %v315 = vmul.f32 %v313, %v314
      %v316 = vsub.f32 1.0, %v315
      %v317 = vmul.f32 %v314, %v316
      %v318 = vadd.f32 %v314, %v317
      %vm319 = vweird.f32 %v313
      %vm320 = vweird.f32 %v314
      %vm321 = vmor %vm319, %vm320
      %v322 = vsel %vm321, %v314, %v318
      %v323 = vand.u32 2147483647, %v313
      %vm324 = vcmp.eq.f32.partialorder %v323, 8.507059e+37
      %v325 = vand.u32 %v313, 2147483648
      %v326 = vor.u32 1.1754944e-38, %v325
      %v327 = vsel %vm324, %v326, %v322
      %v329 = vperm.slane %v327, 0
      %330 = vset.pattern.permute.xlu0 0
      %331 = vperm.xlu0 %330, %v329
      %v332 = vpop.permute.xlu0 %331
      %v334 = vmul.f32 %v312, %v332
      %335 = vst.msk [vmem:[#allocation9] sm:$0xff] %vm170, %v334
    $region29: #{tpu_custom_call.1} parent=1 // pred_fallthru
      _
    // Predicated region
    $region30: #{tpu_custom_call.1} parent=1 // pred_check
      _
    $region31: #{tpu_custom_call.1} parent=1 // pred_check_branch
      %337 = sbr.rel (0) target = $region33
    $region32: #{tpu_custom_call.1} parent=1 // pred_region
      %339 = vsyncadd [#allocation6], 0
      %s341 = sshll.u32 [#allocation9], 4
      %s342 = int_to_ptr.vmem [resolvable:$true] %s341
      %s343 = sshll.u32 %s3, 4
      %s344 = int_to_ptr.hbm [resolvable:$true] %s343
      %346 = dma.vmem_to_hbm [thread:$0]  %s342, 128, %s344, [#allocation6]
    $region33: #{tpu_custom_call.1} parent=1 // pred_fallthru
      _
    // Predicated region
    $region34: #{tpu_custom_call.1} parent=1 // pred_check
      _
    $region35: #{tpu_custom_call.1} parent=1 // pred_check_branch
      %348 = sbr.rel (0) target = $region37
    $region36: #{tpu_custom_call.1} parent=1 // pred_region
      %350 = dma.done [#allocation6], 128
    $region37: #{tpu_custom_call.1} parent=1 // pred_fallthru
      _
    %351 = vsyncpa [#allocation5], 1
    %352 = vsyncpa [#allocation8], 1
    %353 = vsyncpa [#allocation6], 1

</llo_original>
